<compile_context>
chip_gen: v7x
topology: tpu7x:2x2x1
jax: 0.10.0
libtpu: 0.0.40
codegen_flags: <defaults>
</compile_context>

<pallas_src>
import jax
import jax.numpy as jnp
from jax.experimental import pallas as pl
from jax.experimental.pallas import tpu as pltpu


def _copy_kernel(x_ref, o_ref):
    # Straight lane-dense tile copy (vld -> vst); no compute.
    o_ref[...] = x_ref[...]


def _vmem_capacity_bytes() -> int:
    """Physical VMEM of the current chip; conservative fallback = v7x 64 MiB."""
    try:
        return int(pltpu.get_tpu_info().vmem_capacity_bytes)
    except Exception:
        return 64 << 20


def _tile_plan(b: int, d: int, itemsize: int):
    """Choose a (tb, td) tile for a (b, d) copy that respects the (8,128) rule
    and the per-generation VMEM budget."""
    vmem = _vmem_capacity_bytes()
    # Big tiles amortize the ~0.35us/grid-step overhead; 2 arrays x 2 pipeline
    # buffers must still fit comfortably even in v7x's 64 MiB VMEM.
    tile_budget = min(8 << 20, max(1 << 20, vmem // 12))

    # Column tile: keep full D (always legal) unless D is lane-aligned
    # (multiple of 128) AND even a single 8-row slab at full D would exceed
    # the budget -- then tile D in multiples of 128.
    if d % 128 == 0 and 8 * d * itemsize > tile_budget:
        td = (tile_budget // (8 * itemsize)) // 128 * 128
        td = int(max(128, min(td, d)))
    else:
        td = d

    row_bytes = td * itemsize
    if b * row_bytes <= tile_budget:
        tb = b
    else:
        tb = int(max(8, (tile_budget // row_bytes) // 8 * 8))
        tb = min(tb, b)

    # v7x has 2 TensorCores: for larger copies keep >= 2 parallel grid steps
    # so both cores participate; 1-TC chips (v5e/v6e) are unaffected.
    if tb == b and td == d and b >= 16 and b * d * itemsize > (2 << 20):
        tb = max(8, ((b // 2 + 7) // 8) * 8)

    return tb, td, vmem


def _flat_copy_pallas(x2d: jax.Array) -> jax.Array:
    """Materializing (B, D) -> (B, D) copy as an optimized Pallas kernel."""
    b, d = x2d.shape
    itemsize = jnp.dtype(x2d.dtype).itemsize
    tb, td, vmem = _tile_plan(b, d, itemsize)

    grid = (pl.cdiv(b, tb), pl.cdiv(d, td))
    tile_bytes = tb * td * itemsize
    vmem_limit = int(min((vmem * 3) // 4, max(32 << 20, 5 * tile_bytes)))

    return pl.pallas_call(
        _copy_kernel,
        out_shape=jax.ShapeDtypeStruct((b, d), x2d.dtype),
        grid_spec=pltpu.PrefetchScalarGridSpec(
            num_scalar_prefetch=0,
            grid=grid,
            in_specs=[pl.BlockSpec((tb, td), lambda i, j: (i, j))],
            out_specs=pl.BlockSpec((tb, td), lambda i, j: (i, j)),
        ),
        compiler_params=pltpu.CompilerParams(
            dimension_semantics=("parallel", "parallel"),
            vmem_limit_bytes=vmem_limit,
        ),
        cost_estimate=pl.CostEstimate(
            flops=0,
            transcendentals=0,
            bytes_accessed=2 * b * d * itemsize,
        ),
    )(x2d)


def flat_forward(x: jax.Array, materialize: bool = False) -> jax.Array:
    """Equivalent of BasicModule.Flat.forward: (B, ...) -> (B, prod(...)).

    Default path is metadata-only (matches torch .view on contiguous input);
    pass materialize=True to force a fresh buffer via the Pallas copy kernel.
    """
    b = x.shape[0]
    d = 1
    for s in x.shape[1:]:
        d *= s

    x2d = jnp.reshape(x, (b, d))  # row-major collapse, no data movement
    if not materialize:
        return x2d
    return _flat_copy_pallas(x2d)


# TODO(synk): BasicModule.load/save/get_optimizer are checkpoint I/O and
# optimizer construction (no tensor math) — intentionally not translated.


if __name__ == "__main__":
    key = jax.random.PRNGKey(0)

    # Small shape consistent with an image-classification (CatAndDog) input.
    B, C, H, W = 2, 4, 16, 16
    x = jax.random.normal(key, (B, C, H, W), dtype=jnp.float32)
    ref = jnp.reshape(x, (B, C * H * W))

    # 1) Default (copy-free) forward.
    y_view = jax.block_until_ready(flat_forward(x))
    assert y_view.shape == (B, C * H * W), y_view.shape
    assert y_view.dtype == x.dtype, y_view.dtype
    assert bool(jnp.all(y_view == ref)), "view-path flatten mismatch"

    # 2) Materializing Pallas copy path (runs the kernel).
    y_mat = jax.block_until_ready(flat_forward(x, materialize=True))
    assert y_mat.shape == (B, C * H * W), y_mat.shape
    assert y_mat.dtype == x.dtype, y_mat.dtype
    assert bool(jnp.all(y_mat == ref)), "pallas-path flatten mismatch"

    # 3) Lane-ragged D (not a multiple of 128) to exercise the full-D block path.
    x2 = jax.random.normal(key, (2, 3, 10, 10), dtype=jnp.float32)
    ref2 = jnp.reshape(x2, (2, 300))
    y2 = jax.block_until_ready(flat_forward(x2, materialize=True))
    assert y2.shape == (2, 300), y2.shape
    assert bool(jnp.all(y2 == ref2)), "ragged-D flatten mismatch"

    print("KERNEL_OK")
</pallas_src>

<mosaic_0001>
module attributes {stable_mosaic.version = 11 : i64} {
  func.func @_copy_kernel(%arg0: i32, %arg1: i32, %arg2: memref<2x1024xf32, #tpu.memory_space<vmem>>, %arg3: memref<2x1024xf32, #tpu.memory_space<vmem>>) attributes {dimension_semantics = [#tpu.dimension_semantics<parallel>, #tpu.dimension_semantics<parallel>], iteration_bounds = array<i64: 1, 1>, scalar_prefetch = 0 : i64, scratch_operands = 0 : i64, tpu.core_type = #tpu.core_type<tc>, window_params = [{transform_indices = @transform_0, window_bounds = array<i64: 2, 1024>}, {transform_indices = @transform_1, window_bounds = array<i64: 2, 1024>}]} {
    %c0 = arith.constant 0 : index
    %c0_0 = arith.constant 0 : index
    %0 = vector.load %arg2[%c0, %c0_0] : memref<2x1024xf32, #tpu.memory_space<vmem>>, vector<2x1024xf32>
    %c0_1 = arith.constant 0 : index
    %c0_2 = arith.constant 0 : index
    %1 = vector.load %arg3[%c0_1, %c0_2] : memref<2x1024xf32, #tpu.memory_space<vmem>>, vector<2x1024xf32>
    tpu.vector_store %arg3[%c0_1, %c0_2], %0 {strides = array<i32>} : memref<2x1024xf32, #tpu.memory_space<vmem>>, vector<2x1024xf32>,
    return
  }
  func.func @transform_0(%arg0: i32, %arg1: i32) -> (i32, i32) {
    %c0_i32 = arith.constant 0 : i32
    return %arg0, %arg1 : i32, i32
  }
  func.func @transform_1(%arg0: i32, %arg1: i32) -> (i32, i32) {
    %c0_i32 = arith.constant 0 : i32
    return %arg0, %arg1 : i32, i32
  }
}

</mosaic_0001>

<llo_original>
// kernel: tpu_custom_call.1
$region0: #{tpu_custom_call.1}
  #allocation0 [shape = 'u32[]', space=smem, size = 0x4, offset = 0x4, fixed_abs, tag = 'smem constant byte address 0x4 - core index']
  #allocation1 [shape = 'u32[144,128]{1,0:T(1,128)}', space=vmem, size = 0x12000, scoped, tag = 'internal scratch']
  %s0 = inlined_call_operand.hbm [shape: f32[2,1024], index: 0, kind: input, shape index: {}]
  %s1 = inlined_call_operand.hbm [shape: f32[2,1024], index: 1, kind: output, shape index: {}]
  %s2 = sld [smem:[#allocation0]]
  $region18: #{tpu_custom_call.1} parent=0
    _
  %s4 = ssub.s32 1, %s2
  %s5 = scalar_select 0, %s4, %s2
  $region1: #{tpu_custom_call.1} parent=0
    #allocation2 [shape = 'u8[8192]{0}', space=vmem, size = 0x2000, scoped, tag = 'input window, operand 0, single buffered']
    #allocation3 [shape = 's32[1]{0}', space=sflag, size = 0x4, scoped, tag = 'scoped memory for tpu_custom_call.1']
    #allocation4 [shape = 's32[1]{0}', space=sflag, size = 0x4, scoped, tag = 'scoped memory for tpu_custom_call.1']
    #allocation5 [shape = 'u8[8192]{0}', space=vmem, size = 0x2000, scoped, tag = 'output window, operand 0, single buffered']
    %6 = vsyncpa [#allocation3], 0
    %7 = vsyncpa [#allocation4], 0
    // Predicated region
    $region2: #{tpu_custom_call.1} parent=1 // pred_check
      _
    $region3: #{tpu_custom_call.1} parent=1 // pred_check_branch
      %9 = sbr.rel (0) target = $region5
    $region4: #{tpu_custom_call.1} parent=1 // pred_region
      %s11 = ssub.s32 256, 256
      %12 = vsyncadd [#allocation3], %s11
      %s14 = sshll.u32 [#allocation2], 4
      %s15 = int_to_ptr.vmem [resolvable:$true] %s14
      %17 = dma.hbm_to_vmem [thread:$0]  %s0, 256, %s15, [#allocation3]
    $region5: #{tpu_custom_call.1} parent=1 // pred_fallthru
      _
    // Predicated region
    $region6: #{tpu_custom_call.1} parent=1 // pred_check
      _
    $region7: #{tpu_custom_call.1} parent=1 // pred_check_branch
      %19 = sbr.rel (0) target = $region9
    $region8: #{tpu_custom_call.1} parent=1 // pred_region
      %20 = dma.done [#allocation3], 256
    $region9: #{tpu_custom_call.1} parent=1 // pred_fallthru
      _
    %v21 = vld [vmem:[#allocation2] sm:$0xff]
    %v22 = vld [vmem:[#allocation2 + $0x8] sm:$0xff]
    %23 = vst [vmem:[#allocation5] sm:$0xff] %v21
    %24 = vst [vmem:[#allocation5 + $0x8] sm:$0xff] %v22
    // Predicated region
    $region10: #{tpu_custom_call.1} parent=1 // pred_check
      _
    $region11: #{tpu_custom_call.1} parent=1 // pred_check_branch
      %26 = sbr.rel (0) target = $region13
    $region12: #{tpu_custom_call.1} parent=1 // pred_region
      %s28 = ssub.s32 256, 256
      %29 = vsyncadd [#allocation4], %s28
      %s31 = sshll.u32 [#allocation5], 4
      %s32 = int_to_ptr.vmem [resolvable:$true] %s31
      %34 = dma.vmem_to_hbm [thread:$0]  %s32, 256, %s1, [#allocation4]
    $region13: #{tpu_custom_call.1} parent=1 // pred_fallthru
      _
    // Predicated region
    $region14: #{tpu_custom_call.1} parent=1 // pred_check
      _
    $region15: #{tpu_custom_call.1} parent=1 // pred_check_branch
      %36 = sbr.rel (0) target = $region17
    $region16: #{tpu_custom_call.1} parent=1 // pred_region
      %37 = dma.done [#allocation4], 256
    $region17: #{tpu_custom_call.1} parent=1 // pred_fallthru
      _
    %38 = vsyncpa [#allocation3], 1
    %39 = vsyncpa [#allocation4], 1

</llo_original>
